<compile_context>
chip_gen: v7x
topology: tpu7x:2x2x1
jax: 0.10.0
libtpu: 0.0.40
codegen_flags: <defaults>
</compile_context>

<pallas_src>
import jax
import jax.numpy as jnp
from jax.experimental import pallas as pl
from jax.experimental.pallas import tpu as pltpu


def _round_up(x, m):
    return ((x + m - 1) // m) * m


def attention_kernel(c_ref, xt_ref, mask_ref, cmat_ref, bout_ref, zt_ref):
    # c_ref   : (4,)     SMEM  rank-1 QK^T scalars c1..c4
    # xt_ref  : (N, TB)  VMEM  x^T, batch on the lane axis
    # mask_ref: (N*N,TB) VMEM  mask slab, narrow dtype, sublane-dense flatten
    # cmat_ref: (N, 2N)  VMEM  [A | B]  (folded V projection + out_fc weight)
    # bout_ref: (N, 1)   VMEM  out_fc bias
    # zt_ref  : (N, TB)  VMEM  lane-dense output Z^T
    c1 = c_ref[0]
    c2 = c_ref[1]
    c3 = c_ref[2]
    c4 = c_ref[3]

    xt = xt_ref[...]                                   # (N, TB)
    n = xt.shape[0]
    tb = xt.shape[-1]

    # Horner form of the rank-1 expansion:
    #   scores[i,j,b] = (c1*x_i + c3)*x_j + (c2*x_i + c4)
    p = c1 * xt + c3                                   # (N, TB)  cheap
    q = c2 * xt + c4                                   # (N, TB)  cheap
    xj = xt[None, :, :]                                # (1, N, TB) -> col index j

    # Upcast narrow mask, then split sublanes (N*N -> N, N).  The split is at
    # f32 sublane-tile granularity (multiples of 8 when N % 8 == 0): cheap.
    mask = mask_ref[...].astype(jnp.float32).reshape(n, n, tb)

    # 3 full-cube VALU ops: score fma + multiplicative mask (matches torch).
    masked = (p[:, None, :] * xj + q[:, None, :]) * mask        # (N, N, TB)

    # torch nn.Softmax(dim=1): normalize over the row index i (leading axis),
    # without materializing the normalized `soft` cube.
    m = jnp.max(masked, axis=0, keepdims=True)         # (1, N, TB)
    e = jnp.exp(masked - m)                            # (N, N, TB)  EUP
    denom = jnp.sum(e, axis=0, keepdims=True)          # (1, N, TB)
    # Exact reciprocal: acts on the small (1,N,TB) slab, so exactness is free.
    r = pl.reciprocal(denom, approx=False)             # (1, N, TB)
    rx = r * xj                                        # (1, N, TB)

    # soft @ V folded through V's rank-1 form:
    #   sx[i,b]   = sum_j soft[i,j,b] * x[b,j]
    #   ssum[i,b] = sum_j soft[i,j,b]
    sx = jnp.sum(e * rx, axis=1)                       # (N, TB)
    ssum = jnp.sum(e * r, axis=1)                      # (N, TB)

    # Single merged MXU dot:  Z^T = [A|B] @ [sx; ssum] + b_out
    stacked = jnp.concatenate([sx, ssum], axis=0)      # (2N, TB)
    zt_ref[...] = (
        jnp.dot(cmat_ref[...], stacked, preferred_element_type=jnp.float32)
        + bout_ref[...]
    )


def init_attention_layer(mask, w_q, w_k, w_v, b_q, b_k, b_v, w_out, b_out,
                         *, block_b=2048, mask_dtype=jnp.bfloat16,
                         min_pallas_batch=129):
    """One-time preparation (mirrors torch __init__: mask is a fixed buffer).

    mask: (B, N, N); w_*/b_*: (1, 1, H); w_out: (N, N*H); b_out: (N,).
    Use mask_dtype=jnp.float32 if the mask is non-binary and full precision is
    required (bf16 is exact for 0/1 masks).
    """
    batch, n, _ = mask.shape
    hidden = w_q.shape[-1]

    wq = w_q.reshape(hidden).astype(jnp.float32)
    wk = w_k.reshape(hidden).astype(jnp.float32)
    wv = w_v.reshape(hidden).astype(jnp.float32)
    bq = b_q.reshape(hidden).astype(jnp.float32)
    bk = b_k.reshape(hidden).astype(jnp.float32)
    bv = b_v.reshape(hidden).astype(jnp.float32)

    # Rank-1 structure: Q[b,i,:] = x[b,i]*w_q + b_q (same for K), so
    #   (QK^T)[b,i,j] = c1*x_i*x_j + c2*x_i + c3*x_j + c4.
    c_vec = jnp.stack([jnp.dot(wq, wk), jnp.dot(wq, bk),
                       jnp.dot(bq, wk), jnp.dot(bq, bk)]).astype(jnp.float32)

    # Fold V projection + out_fc weight (row-major .view ordering preserved):
    #   A[m,i] = sum_h W_out[m, i*H+h]*w_v[h],  B likewise with b_v.
    w3 = w_out.reshape(n, n, hidden).astype(jnp.float32)
    a_mat = jnp.einsum("mih,h->mi", w3, wv)            # (N, N)
    b_mat = jnp.einsum("mih,h->mi", w3, bv)            # (N, N)
    c_mat = jnp.concatenate([a_mat, b_mat], axis=1)    # (N, 2N)  merged dot
    bout = b_out.reshape(n, 1).astype(jnp.float32)

    use_pallas = batch >= min_pallas_batch
    params = dict(n=n, batch=batch, c_vec=c_vec, c_mat=c_mat, bout=bout,
                  a_mat=a_mat, b_mat=b_mat, use_pallas=use_pallas)

    if not use_pallas:
        # Tiny batches: the fused pure-JAX path beats kernel launch overhead.
        params["mask_bnn"] = mask.astype(jnp.float32)
        return params

    # Batch tiling: batch lives on the LANE axis.  tb is either the full
    # (unpadded) batch for small B, or a multiple of 128 chosen so that large
    # batches always give >= 2 "parallel" grid steps (both v7x TensorCores).
    block_b = max(128, _round_up(block_b, 128))        # sweep 1024-4096
    if batch <= 128:
        tb, b_pad = batch, batch
    else:
        tb = min(block_b, _round_up(-(-batch // 2), 128))
        b_pad = _round_up(batch, tb)

    # Mask buffer, prepared ONCE: (B,N,N) -> (N*N, B_pad) narrow dtype.
    # Flattening (i,j) onto the sublane axis keeps the narrow dtype densely
    # packed (no 8->16 sublane padding), so the HBM stream really shrinks.
    mask_t = jnp.transpose(mask, (1, 2, 0)).reshape(n * n, batch)
    mask_t = mask_t.astype(mask_dtype)
    if b_pad != batch:
        mask_t = jnp.pad(mask_t, ((0, 0), (0, b_pad - batch)))
    params.update(mask_t=mask_t, tb=tb, b_pad=b_pad)
    return params


def apply_attention_layer(params, x):
    """Forward pass: x (B, N) -> Z (B, N).  Matches AttentionLayer.forward."""
    batch, n = x.shape
    assert batch == params["batch"] and n == params["n"]

    if not params["use_pallas"]:
        # Fused pure-JAX fallback (algebraically identical to the kernel).
        c1, c2, c3, c4 = (params["c_vec"][i] for i in range(4))
        xf = x.astype(jnp.float32)
        xi = xf[:, :, None]
        xj = xf[:, None, :]
        masked = (c1 * xi * xj + c2 * xi + c3 * xj + c4) * params["mask_bnn"]
        soft = jax.nn.softmax(masked, axis=1)          # torch dim=1
        sx = jnp.einsum("bij,bj->bi", soft, xf)
        ssum = jnp.sum(soft, axis=2)
        return (sx @ params["a_mat"].T + ssum @ params["b_mat"].T
                + params["bout"].reshape(-1))

    tb, b_pad = params["tb"], params["b_pad"]
    xt = x.astype(jnp.float32).T                       # (N, B) — tiny
    if b_pad != batch:
        xt = jnp.pad(xt, ((0, 0), (0, b_pad - batch)))

    grid = (b_pad // tb,)
    out_t = pl.pallas_call(
        attention_kernel,
        out_shape=jax.ShapeDtypeStruct((n, b_pad), jnp.float32),
        grid_spec=pltpu.PrefetchScalarGridSpec(
            num_scalar_prefetch=0,
            grid=grid,
            in_specs=[
                pl.BlockSpec(memory_space=pltpu.MemorySpace.SMEM),   # c1..c4
                pl.BlockSpec((n, tb), lambda b: (0, b)),             # x^T
                pl.BlockSpec((n * n, tb), lambda b: (0, b)),         # mask
                pl.BlockSpec((n, 2 * n), lambda b: (0, 0)),          # [A|B]
                pl.BlockSpec((n, 1), lambda b: (0, 0)),              # b_out
            ],
            out_specs=pl.BlockSpec((n, tb), lambda b: (0, b)),       # Z^T
        ),
        compiler_params=pltpu.CompilerParams(
            dimension_semantics=("parallel",)),
    )(params["c_vec"], xt, params["mask_t"], params["c_mat"], params["bout"])

    return out_t[:, :batch].T                          # (B, N)


def reference(x, mask, w_q, w_k, w_v, b_q, b_k, b_v, w_out, b_out):
    """Pure-JAX reference mirroring the PyTorch forward exactly."""
    xb = x[:, :, None]
    q = xb * w_q.reshape(1, 1, -1) + b_q.reshape(1, 1, -1)
    k = xb * w_k.reshape(1, 1, -1) + b_k.reshape(1, 1, -1)
    v = xb * w_v.reshape(1, 1, -1) + b_v.reshape(1, 1, -1)
    scores = jnp.einsum("bih,bjh->bij", q, k)
    masked = scores * mask
    soft = jax.nn.softmax(masked, axis=1)              # torch dim=1
    sv = jnp.einsum("bij,bjh->bih", soft, v)
    flat = sv.reshape(x.shape[0], -1)
    return flat @ w_out.T + b_out


def _make_inputs(key, batch, num_obs, hidden_dim):
    keys = jax.random.split(key, 10)
    x = jax.random.normal(keys[0], (batch, num_obs), jnp.float32)
    mask = (jax.random.uniform(keys[1], (batch, num_obs, num_obs)) > 0.3
            ).astype(jnp.float32)
    w_q = jax.random.normal(keys[2], (1, 1, hidden_dim), jnp.float32)
    w_k = jax.random.normal(keys[3], (1, 1, hidden_dim), jnp.float32)
    w_v = jax.random.normal(keys[4], (1, 1, hidden_dim), jnp.float32)
    b_q = jax.random.normal(keys[5], (1, 1, hidden_dim), jnp.float32)
    b_k = jax.random.normal(keys[6], (1, 1, hidden_dim), jnp.float32)
    b_v = jax.random.normal(keys[7], (1, 1, hidden_dim), jnp.float32)
    fan_in = num_obs * hidden_dim
    bound = 1.0 / (fan_in ** 0.5)
    w_out = jax.random.uniform(keys[8], (num_obs, fan_in), jnp.float32,
                               -bound, bound)
    b_out = jax.random.uniform(keys[9], (num_obs,), jnp.float32, -bound, bound)
    return x, mask, (w_q, w_k, w_v, b_q, b_k, b_v, w_out, b_out)


if __name__ == "__main__":
    num_obs, hidden_dim = 8, 32
    key = jax.random.PRNGKey(0)
    k_small, k_big = jax.random.split(key)

    # --- 1) Module-native tiny shapes, Pallas path forced so the kernel runs.
    batch = 2
    x, mask, w = _make_inputs(k_small, batch, num_obs, hidden_dim)
    params = init_attention_layer(mask, *w, min_pallas_batch=0)
    z = jax.block_until_ready(apply_attention_layer(params, x))
    z_ref = reference(x, mask, *w)
    assert z.shape == (batch, num_obs)
    assert jnp.allclose(z, z_ref, atol=2e-3, rtol=2e-3), (z, z_ref)

    # --- 2) Larger batch: multi-tile "parallel" grid + batch padding path.
    batch2 = 384
    x2, mask2, w2 = _make_inputs(k_big, batch2, num_obs, hidden_dim)
    params2 = init_attention_layer(mask2, *w2, block_b=2048)
    z2 = jax.block_until_ready(apply_attention_layer(params2, x2))
    z2_ref = reference(x2, mask2, *w2)
    assert z2.shape == (batch2, num_obs)
    assert jnp.allclose(z2, z2_ref, atol=2e-3, rtol=2e-3), (
        float(jnp.max(jnp.abs(z2 - z2_ref))))

    # --- 3) Default dispatch at tiny batch uses the fused pure-JAX fallback.
    params3 = init_attention_layer(mask, *w)           # min_pallas_batch=129
    z3 = jax.block_until_ready(apply_attention_layer(params3, x))
    assert jnp.allclose(z3, z_ref, atol=2e-3, rtol=2e-3), (z3, z_ref)

    print("KERNEL_OK")
</pallas_src>

<mosaic_0001>
module attributes {stable_mosaic.version = 11 : i64} {
  func.func @attention_kernel(%arg0: i32, %arg1: memref<4xf32, #tpu.memory_space<smem>>, %arg2: memref<8x2xf32, #tpu.memory_space<vmem>>, %arg3: memref<64x2xbf16, #tpu.memory_space<vmem>>, %arg4: memref<8x16xf32, #tpu.memory_space<vmem>>, %arg5: memref<8x1xf32, #tpu.memory_space<vmem>>, %arg6: memref<8x2xf32, #tpu.memory_space<vmem>>) attributes {dimension_semantics = [#tpu.dimension_semantics<parallel>], iteration_bounds = array<i64: 1>, scalar_prefetch = 0 : i64, scratch_operands = 0 : i64, tpu.core_type = #tpu.core_type<tc>, window_params = [{transform_indices = @transform_0, window_bounds = array<i64: 4>}, {transform_indices = @transform_1, window_bounds = array<i64: 8, 2>}, {transform_indices = @transform_2, window_bounds = array<i64: 64, 2>}, {pipeline_mode = #tpu.pipeline_mode<synchronous>, transform_indices = @transform_3, window_bounds = array<i64: 8, 16>}, {pipeline_mode = #tpu.pipeline_mode<synchronous>, transform_indices = @transform_4, window_bounds = array<i64: 8, 1>}, {transform_indices = @transform_5, window_bounds = array<i64: 8, 2>}]} {
    %c0 = arith.constant 0 : index
    %0 = memref.load %arg1[%c0] : memref<4xf32, #tpu.memory_space<smem>>
    %c1 = arith.constant 1 : index
    %1 = memref.load %arg1[%c1] : memref<4xf32, #tpu.memory_space<smem>>
    %c2 = arith.constant 2 : index
    %2 = memref.load %arg1[%c2] : memref<4xf32, #tpu.memory_space<smem>>
    %c3 = arith.constant 3 : index
    %3 = memref.load %arg1[%c3] : memref<4xf32, #tpu.memory_space<smem>>
    %c0_0 = arith.constant 0 : index
    %c0_1 = arith.constant 0 : index
    %4 = vector.load %arg2[%c0_0, %c0_1] : memref<8x2xf32, #tpu.memory_space<vmem>>, vector<8x2xf32>
    %5 = vector.broadcast %0 : f32 to vector<8x2xf32>
    %6 = arith.mulf %5, %4 : vector<8x2xf32>
    %7 = vector.broadcast %2 : f32 to vector<8x2xf32>
    %8 = arith.addf %6, %7 : vector<8x2xf32>
    %9 = vector.broadcast %1 : f32 to vector<8x2xf32>
    %10 = arith.mulf %9, %4 : vector<8x2xf32>
    %11 = vector.broadcast %3 : f32 to vector<8x2xf32>
    %12 = arith.addf %10, %11 : vector<8x2xf32>
    %13 = vector.shape_cast %4 : vector<8x2xf32> to vector<1x8x2xf32>
    %c0_2 = arith.constant 0 : index
    %c0_3 = arith.constant 0 : index
    %14 = vector.load %arg3[%c0_2, %c0_3] : memref<64x2xbf16, #tpu.memory_space<vmem>>, vector<64x2xbf16>
    %15 = arith.extf %14 : vector<64x2xbf16> to vector<64x2xf32>
    %16 = vector.shape_cast %15 : vector<64x2xf32> to vector<8x8x2xf32>
    %17 = vector.shape_cast %8 : vector<8x2xf32> to vector<8x1x2xf32>
    %18 = vector.broadcast %17 : vector<8x1x2xf32> to vector<8x8x2xf32>
    %19 = vector.broadcast %13 : vector<1x8x2xf32> to vector<8x8x2xf32>
    %20 = arith.mulf %18, %19 : vector<8x8x2xf32>
    %21 = vector.shape_cast %12 : vector<8x2xf32> to vector<8x1x2xf32>
    %22 = vector.broadcast %21 : vector<8x1x2xf32> to vector<8x8x2xf32>
    %23 = arith.addf %20, %22 : vector<8x8x2xf32>
    %24 = arith.mulf %23, %16 : vector<8x8x2xf32>
    %cst = arith.constant dense<0xFF800000> : vector<8x2xf32>
    %25 = vector.multi_reduction <maximumf>, %24, %cst [0] : vector<8x8x2xf32> to vector<8x2xf32>
    %26 = vector.shape_cast %25 : vector<8x2xf32> to vector<1x8x2xf32>
    %27 = vector.broadcast %26 : vector<1x8x2xf32> to vector<8x8x2xf32>
    %28 = arith.subf %24, %27 : vector<8x8x2xf32>
    %29 = math.exp %28 : vector<8x8x2xf32>
    %cst_4 = arith.constant dense<0.000000e+00> : vector<8x2xf32>
    %30 = vector.multi_reduction <add>, %29, %cst_4 [0] : vector<8x8x2xf32> to vector<8x2xf32>
    %31 = vector.shape_cast %30 : vector<8x2xf32> to vector<1x8x2xf32>
    %32 = tpu.reciprocal %31 : vector<1x8x2xf32> -> vector<1x8x2xf32>
    %33 = arith.mulf %32, %13 : vector<1x8x2xf32>
    %34 = vector.broadcast %33 : vector<1x8x2xf32> to vector<8x8x2xf32>
    %35 = arith.mulf %29, %34 : vector<8x8x2xf32>
    %cst_5 = arith.constant dense<0.000000e+00> : vector<8x2xf32>
    %36 = vector.multi_reduction <add>, %35, %cst_5 [1] : vector<8x8x2xf32> to vector<8x2xf32>
    %37 = vector.broadcast %32 : vector<1x8x2xf32> to vector<8x8x2xf32>
    %38 = arith.mulf %29, %37 : vector<8x8x2xf32>
    %cst_6 = arith.constant dense<0.000000e+00> : vector<8x2xf32>
    %39 = vector.multi_reduction <add>, %38, %cst_6 [1] : vector<8x8x2xf32> to vector<8x2xf32>
    %40 = tpu.concatenate %36, %39 in 0 : vector<8x2xf32>, vector<8x2xf32> -> vector<16x2xf32>
    %c0_7 = arith.constant 0 : index
    %c0_8 = arith.constant 0 : index
    %41 = vector.load %arg4[%c0_7, %c0_8] : memref<8x16xf32, #tpu.memory_space<vmem>>, vector<8x16xf32>
    %cst_9 = arith.constant dense<0.000000e+00> : vector<8x2xf32>
    %42 = tpu.matmul %41, %40, %cst_9 {dimension_numbers = #tpu.dot_dimension_numbers<[1], [0], [0], [1], [0, 0, 1, 1], [], []>} : vector<8x16xf32>, vector<16x2xf32>, vector<8x2xf32> -> vector<8x2xf32>
    %c0_10 = arith.constant 0 : index
    %c0_11 = arith.constant 0 : index
    %43 = vector.load %arg5[%c0_10, %c0_11] : memref<8x1xf32, #tpu.memory_space<vmem>>, vector<8x1xf32>
    %44 = vector.broadcast %43 : vector<8x1xf32> to vector<8x2xf32>
    %45 = arith.addf %42, %44 : vector<8x2xf32>
    %c0_12 = arith.constant 0 : index
    %c0_13 = arith.constant 0 : index
    %46 = vector.load %arg6[%c0_12, %c0_13] : memref<8x2xf32, #tpu.memory_space<vmem>>, vector<8x2xf32>
    tpu.vector_store %arg6[%c0_12, %c0_13], %45 {strides = array<i32>} : memref<8x2xf32, #tpu.memory_space<vmem>>, vector<8x2xf32>,
    return
  }
  func.func @transform_0(%arg0: i32) -> i32 {
    %c0_i32 = arith.constant 0 : i32
    %c0_i32_0 = arith.constant 0 : i32
    return %c0_i32 : i32
  }
  func.func @transform_1(%arg0: i32) -> (i32, i32) {
    %c0_i32 = arith.constant 0 : i32
    %c0_i32_0 = arith.constant 0 : i32
    return %c0_i32, %arg0 : i32, i32
  }
  func.func @transform_2(%arg0: i32) -> (i32, i32) {
    %c0_i32 = arith.constant 0 : i32
    %c0_i32_0 = arith.constant 0 : i32
    return %c0_i32, %arg0 : i32, i32
  }
  func.func @transform_3(%arg0: i32) -> (i32, i32) {
    %c0_i32 = arith.constant 0 : i32
    %c0_i32_0 = arith.constant 0 : i32
    %c0_i32_1 = arith.constant 0 : i32
    return %c0_i32, %c0_i32_0 : i32, i32
  }
  func.func @transform_4(%arg0: i32) -> (i32, i32) {
    %c0_i32 = arith.constant 0 : i32
    %c0_i32_0 = arith.constant 0 : i32
    %c0_i32_1 = arith.constant 0 : i32
    return %c0_i32, %c0_i32_0 : i32, i32
  }
  func.func @transform_5(%arg0: i32) -> (i32, i32) {
    %c0_i32 = arith.constant 0 : i32
    %c0_i32_0 = arith.constant 0 : i32
    return %c0_i32, %arg0 : i32, i32
  }
}

</mosaic_0001>

<llo_original>
// kernel: tpu_custom_call.1
$region0: #{tpu_custom_call.1}
  #allocation0 [shape = 'u32[]', space=smem, size = 0x4, offset = 0x4, fixed_abs, tag = 'smem constant byte address 0x4 - core index']
  #allocation1 [shape = 'u32[144,128]{1,0:T(1,128)}', space=vmem, size = 0x12000, scoped, tag = 'internal scratch']
  %s0 = inlined_call_operand.vmem [shape: f32[4], index: 0, kind: input, shape index: {}]
  %s1 = inlined_call_operand.vmem [shape: f32[8,2], index: 1, kind: input, shape index: {}]
  %s2 = inlined_call_operand.vmem [shape: bf16[64,2], index: 2, kind: input, shape index: {}]
  %s3 = inlined_call_operand.vmem [shape: f32[8,16], index: 3, kind: input, shape index: {}]
  %s4 = inlined_call_operand.vmem [shape: f32[8,1], index: 4, kind: input, shape index: {}]
  %s5 = inlined_call_operand.vmem [shape: f32[8,2], index: 5, kind: output, shape index: {}]
  %s6 = sld [smem:[#allocation0]]
  $region34: #{tpu_custom_call.1} parent=0
    _
  %s8 = ssub.s32 1, %s6
  %s9 = scalar_select 0, %s8, %s6
  $region1: #{tpu_custom_call.1} parent=0
    #allocation2 [shape = 'u8[512]{0}', space=smem, size = 0x200, scoped, tag = 'input window, operand 0, single buffered']
    #allocation3 [shape = 's32[1]{0}', space=sflag, size = 0x4, scoped, tag = 'scoped memory for tpu_custom_call.1']
    %10 = vsyncpa [#allocation3], 0
    // Predicated region
    $region2: #{tpu_custom_call.1} parent=1 // pred_check
      _
    $region3: #{tpu_custom_call.1} parent=1 // pred_check_branch
      %12 = sbr.rel (0) target = $region5
    $region4: #{tpu_custom_call.1} parent=1 // pred_region
      %s14 = ssub.s32 16, 16
      %15 = vsyncadd [#allocation3], %s14
      %s17 = sshll.u32 %s0, 4
      %s18 = int_to_ptr.vmem [resolvable:$true] %s17
      %20 = dma.vmem_to_smem %s18, 16, [#allocation2], [#allocation3]
    $region5: #{tpu_custom_call.1} parent=1 // pred_fallthru
      _
    // Predicated region
    $region6: #{tpu_custom_call.1} parent=1 // pred_check
      _
    $region7: #{tpu_custom_call.1} parent=1 // pred_check_branch
      %22 = sbr.rel (0) target = $region9
    $region8: #{tpu_custom_call.1} parent=1 // pred_region
      _
    $region9: #{tpu_custom_call.1} parent=1 // pred_fallthru
      _
    // Predicated region
    $region10: #{tpu_custom_call.1} parent=1 // pred_check
      _
    $region11: #{tpu_custom_call.1} parent=1 // pred_check_branch
      %24 = sbr.rel (0) target = $region13
    $region12: #{tpu_custom_call.1} parent=1 // pred_region
      _
    $region13: #{tpu_custom_call.1} parent=1 // pred_fallthru
      _
    // Predicated region
    $region14: #{tpu_custom_call.1} parent=1 // pred_check
      _
    $region15: #{tpu_custom_call.1} parent=1 // pred_check_branch
      %26 = sbr.rel (0) target = $region17
    $region16: #{tpu_custom_call.1} parent=1 // pred_region
      _
    $region17: #{tpu_custom_call.1} parent=1 // pred_fallthru
      _
    // Predicated region
    $region18: #{tpu_custom_call.1} parent=1 // pred_check
      _
    $region19: #{tpu_custom_call.1} parent=1 // pred_check_branch
      %28 = sbr.rel (0) target = $region21
    $region20: #{tpu_custom_call.1} parent=1 // pred_region
      _
    $region21: #{tpu_custom_call.1} parent=1 // pred_fallthru
      _
    // Predicated region
    $region22: #{tpu_custom_call.1} parent=1 // pred_check
      _
    $region23: #{tpu_custom_call.1} parent=1 // pred_check_branch
      %30 = sbr.rel (0) target = $region25
    $region24: #{tpu_custom_call.1} parent=1 // pred_region
      %31 = dma.done [#allocation3], 16
    $region25: #{tpu_custom_call.1} parent=1 // pred_fallthru
      _
    %32 = sfence
    %s33 = sld [smem:[#allocation2]]
    %s34 = sld [smem:[#allocation2 + $0x1]]
    %s35 = sld [smem:[#allocation2 + $0x2]]
    %s36 = sld [smem:[#allocation2 + $0x3]]
    %v37 = vld [vmem:[%s1] sm:$0xff]
    %v38 = vstv %s33
    %v39 = vmul.f32 %v38, %v37
    %v40 = vstv %s35
    %v41 = vadd.f32 %v39, %v40
    %v42 = vstv %s34
    %v43 = vmul.f32 %v42, %v37
    %v44 = vstv %s36
    %v45 = vadd.f32 %v43, %v44
    %v46 = vld [vmem:[%s2] sm:$0xf]
    %v47 = vld [vmem:[%s2 + $0x4] sm:$0xf]
    %v48 = vld [vmem:[%s2 + $0x8] sm:$0xf]
    %v49 = vld [vmem:[%s2 + $0xc] sm:$0xf]
    %v50 = vld [vmem:[%s2 + $0x10] sm:$0xf]
    %v51 = vld [vmem:[%s2 + $0x14] sm:$0xf]
    %v52 = vld [vmem:[%s2 + $0x18] sm:$0xf]
    %v53 = vld [vmem:[%s2 + $0x1c] sm:$0xf]
    %v54 = vunpack.c.l.bf16 %v46
    %v55 = vunpack.c.l.bf16 %v47
    %v56 = vunpack.c.l.bf16 %v48
    %v57 = vunpack.c.l.bf16 %v49
    %v58 = vunpack.c.l.bf16 %v50
    %v59 = vunpack.c.l.bf16 %v51
    %v60 = vunpack.c.l.bf16 %v52
    %v61 = vunpack.c.l.bf16 %v53
    %v63 = vcombine.high %v41, %v41
    %v65 = vunpack.c.l.s4 1966171168
    %v66 = vunpack.c.0.s8 %v65
    %v67 = vlaneseq
    %v68 = vshrl.u32 %v67, 7
    %v69 = vsub.s32 %v66, %v68
    %v70 = vrot.slane %v41, %v69
    %v72 = vunpack.c.l.s4 1966171168
    %v73 = vunpack.c.0.s8 %v72
    %v74 = vlaneseq
    %v75 = vshrl.u32 %v74, 7
    %v76 = vsub.s32 %v73, %v75
    %v77 = vrot.slane %v63, %v76
    %v78 = vcombine.high %v70, %v70
    %v79 = vcombine.high %v77, %v77
    %v81 = vunpack.c.l.s4 1966171168
    %v82 = vunpack.c.0.s8 %v81
    %v83 = vlaneseq
    %v84 = vshrl.u32 %v83, 7
    %v85 = vsub.s32 %v82, %v84
    %v86 = vrot.slane %v70, %v85
    %v88 = vunpack.c.l.s4 1966171168
    %v89 = vunpack.c.0.s8 %v88
    %v90 = vlaneseq
    %v91 = vshrl.u32 %v90, 7
    %v92 = vsub.s32 %v89, %v91
    %v93 = vrot.slane %v77, %v92
    %v95 = vunpack.c.l.s4 1966171168
    %v96 = vunpack.c.0.s8 %v95
    %v97 = vlaneseq
    %v98 = vshrl.u32 %v97, 7
    %v99 = vsub.s32 %v96, %v98
    %v100 = vrot.slane %v78, %v99
    %v102 = vunpack.c.l.s4 1966171168
    %v103 = vunpack.c.0.s8 %v102
    %v104 = vlaneseq
    %v105 = vshrl.u32 %v104, 7
    %v106 = vsub.s32 %v103, %v105
    %v107 = vrot.slane %v79, %v106
    %v108 = vcombine.high %v86, %v86
    %v109 = vcombine.high %v93, %v93
    %v110 = vcombine.high %v100, %v100
    %v111 = vcombine.high %v107, %v107
    %v112 = vlaneseq
    %v113 = vshrl.u32 %v112, 7
    %v114 = vsub.s32 0, %v113
    %v115 = vrot.slane %v86, %v114
    %v116 = vlaneseq
    %v117 = vshrl.u32 %v116, 7
    %v118 = vsub.s32 0, %v117
    %v119 = vrot.slane %v100, %v118
    %v120 = vlaneseq
    %v121 = vshrl.u32 %v120, 7
    %v122 = vsub.s32 0, %v121
    %v123 = vrot.slane %v108, %v122
    %v124 = vlaneseq
    %v125 = vshrl.u32 %v124, 7
    %v126 = vsub.s32 0, %v125
    %v127 = vrot.slane %v110, %v126
    %v128 = vlaneseq
    %v129 = vshrl.u32 %v128, 7
    %v130 = vsub.s32 0, %v129
    %v131 = vrot.slane %v93, %v130
    %v132 = vlaneseq
    %v133 = vshrl.u32 %v132, 7
    %v134 = vsub.s32 0, %v133
    %v135 = vrot.slane %v107, %v134
    %v136 = vlaneseq
    %v137 = vshrl.u32 %v136, 7
    %v138 = vsub.s32 0, %v137
    %v139 = vrot.slane %v109, %v138
    %v140 = vlaneseq
    %v141 = vshrl.u32 %v140, 7
    %v142 = vsub.s32 0, %v141
    %v143 = vrot.slane %v111, %v142
    %v152 = vmul.f32 %v115, %v37
    %v153 = vmul.f32 %v119, %v37
    %v154 = vmul.f32 %v123, %v37
    %v155 = vmul.f32 %v127, %v37
    %v156 = vmul.f32 %v131, %v37
    %v157 = vmul.f32 %v135, %v37
    %v158 = vmul.f32 %v139, %v37
    %v159 = vmul.f32 %v143, %v37
    %v161 = vcombine.high %v45, %v45
    %v163 = vunpack.c.l.s4 1966171168
    %v164 = vunpack.c.0.s8 %v163
    %v165 = vlaneseq
    %v166 = vshrl.u32 %v165, 7
    %v167 = vsub.s32 %v164, %v166
    %v168 = vrot.slane %v45, %v167
    %v170 = vunpack.c.l.s4 1966171168
    %v171 = vunpack.c.0.s8 %v170
    %v172 = vlaneseq
    %v173 = vshrl.u32 %v172, 7
    %v174 = vsub.s32 %v171, %v173
    %v175 = vrot.slane %v161, %v174
    %v176 = vcombine.high %v168, %v168
    %v177 = vcombine.high %v175, %v175
    %v179 = vunpack.c.l.s4 1966171168
    %v180 = vunpack.c.0.s8 %v179
    %v181 = vlaneseq
    %v182 = vshrl.u32 %v181, 7
    %v183 = vsub.s32 %v180, %v182
    %v184 = vrot.slane %v168, %v183
    %v186 = vunpack.c.l.s4 1966171168
    %v187 = vunpack.c.0.s8 %v186
    %v188 = vlaneseq
    %v189 = vshrl.u32 %v188, 7
    %v190 = vsub.s32 %v187, %v189
    %v191 = vrot.slane %v175, %v190
    %v193 = vunpack.c.l.s4 1966171168
    %v194 = vunpack.c.0.s8 %v193
    %v195 = vlaneseq
    %v196 = vshrl.u32 %v195, 7
    %v197 = vsub.s32 %v194, %v196
    %v198 = vrot.slane %v176, %v197
    %v200 = vunpack.c.l.s4 1966171168
    %v201 = vunpack.c.0.s8 %v200
    %v202 = vlaneseq
    %v203 = vshrl.u32 %v202, 7
    %v204 = vsub.s32 %v201, %v203
    %v205 = vrot.slane %v177, %v204
    %v206 = vcombine.high %v184, %v184
    %v207 = vcombine.high %v191, %v191
    %v208 = vcombine.high %v198, %v198
    %v209 = vcombine.high %v205, %v205
    %v210 = vlaneseq
    %v211 = vshrl.u32 %v210, 7
    %v212 = vsub.s32 0, %v211
    %v213 = vrot.slane %v184, %v212
    %v214 = vlaneseq
    %v215 = vshrl.u32 %v214, 7
    %v216 = vsub.s32 0, %v215
    %v217 = vrot.slane %v198, %v216
    %v218 = vlaneseq
    %v219 = vshrl.u32 %v218, 7
    %v220 = vsub.s32 0, %v219
    %v221 = vrot.slane %v206, %v220
    %v222 = vlaneseq
    %v223 = vshrl.u32 %v222, 7
    %v224 = vsub.s32 0, %v223
    %v225 = vrot.slane %v208, %v224
    %v226 = vlaneseq
    %v227 = vshrl.u32 %v226, 7
    %v228 = vsub.s32 0, %v227
    %v229 = vrot.slane %v191, %v228
    %v230 = vlaneseq
    %v231 = vshrl.u32 %v230, 7
    %v232 = vsub.s32 0, %v231
    %v233 = vrot.slane %v205, %v232
    %v234 = vlaneseq
    %v235 = vshrl.u32 %v234, 7
    %v236 = vsub.s32 0, %v235
    %v237 = vrot.slane %v207, %v236
    %v238 = vlaneseq
    %v239 = vshrl.u32 %v238, 7
    %v240 = vsub.s32 0, %v239
    %v241 = vrot.slane %v209, %v240
    %v250 = vadd.f32 %v152, %v213
    %v251 = vadd.f32 %v153, %v217
    %v252 = vadd.f32 %v154, %v221
    %v253 = vadd.f32 %v155, %v225
    %v254 = vadd.f32 %v156, %v229
    %v255 = vadd.f32 %v157, %v233
    %v256 = vadd.f32 %v158, %v237
    %v257 = vadd.f32 %v159, %v241
    %v258 = vmul.f32 %v250, %v54
    %v259 = vmul.f32 %v251, %v55
    %v260 = vmul.f32 %v252, %v56
    %v261 = vmul.f32 %v253, %v57
    %v262 = vmul.f32 %v254, %v58
    %v263 = vmul.f32 %v255, %v59
    %v264 = vmul.f32 %v256, %v60
    %v265 = vmul.f32 %v257, %v61
    %vm266 = vcmask 15360
    %v267 = vsel %vm266, %v258, -inf
    %v268 = vsel %vm266, %v259, -inf
    %v269 = vsel %vm266, %v260, -inf
    %v270 = vsel %vm266, %v261, -inf
    %v271 = vsel %vm266, %v262, -inf
    %v272 = vmax.f32 %v267, %v271
    %v273 = vsel %vm266, %v263, -inf
    %v274 = vmax.f32 %v268, %v273
    %v275 = vsel %vm266, %v264, -inf
    %v276 = vmax.f32 %v269, %v275
    %v277 = vsel %vm266, %v265, -inf
    %v278 = vmax.f32 %v270, %v277
    %v279 = vmax.f32 %v272, %v274
    %v280 = vmax.f32 %v276, %v278
    %v281 = vmax.f32 %v279, %v280
    %v282 = vsub.f32 %v258, %v281
    %v283 = vsub.f32 %v259, %v281
    %v284 = vsub.f32 %v260, %v281
    %v285 = vsub.f32 %v261, %v281
    %v286 = vsub.f32 %v262, %v281
    %v287 = vsub.f32 %v263, %v281
    %v288 = vsub.f32 %v264, %v281
    %v289 = vsub.f32 %v265, %v281
    %v290 = vmul.f32 %v282, 1.442695
    %v291 = vpow.pop %v290
    %v292 = vmul.f32 %v283, 1.442695
    %v293 = vpow.pop %v292
    %v294 = vmul.f32 %v284, 1.442695
    %v295 = vpow.pop %v294
    %v296 = vmul.f32 %v285, 1.442695
    %v297 = vpow.pop %v296
    %v298 = vmul.f32 %v286, 1.442695
    %v299 = vpow.pop %v298
    %v300 = vmul.f32 %v287, 1.442695
    %v301 = vpow.pop %v300
    %v302 = vmul.f32 %v288, 1.442695
    %v303 = vpow.pop %v302
    %v304 = vmul.f32 %v289, 1.442695
    %v305 = vpow.pop %v304
    %v306 = vsel %vm266, %v291, 0.0
    %v307 = vsel %vm266, %v293, 0.0
    %v308 = vadd.f32 %v306, %v307
    %v309 = vsel %vm266, %v295, 0.0
    %v310 = vadd.f32 %v308, %v309
    %v311 = vsel %vm266, %v297, 0.0
    %v312 = vadd.f32 %v310, %v311
    %v313 = vsel %vm266, %v299, 0.0
    %v314 = vadd.f32 %v312, %v313
    %v315 = vsel %vm266, %v301, 0.0
    %v316 = vadd.f32 %v314, %v315
    %v317 = vsel %vm266, %v303, 0.0
    %v318 = vadd.f32 %v316, %v317
    %v319 = vsel %vm266, %v305, 0.0
    %v320 = vadd.f32 %v318, %v319
    %v321 = vrcp.pop %v320
    %v322 = vmul.f32 %v321, %v37
    %v323 = vmul.f32 %v291, %v322
    %v324 = vmul.f32 %v293, %v322
    %v325 = vmul.f32 %v295, %v322
    %v326 = vmul.f32 %v297, %v322
    %v327 = vmul.f32 %v299, %v322
    %v328 = vmul.f32 %v301, %v322
    %v329 = vmul.f32 %v303, %v322
    %v330 = vmul.f32 %v305, %v322
    %v331 = vsel %vm266, %v323, 0.0
    %v332 = vrot.slane %v331, 4
    %v333 = vadd.f32 %v331, %v332
    %v334 = vrot.slane %v333, 2
    %v335 = vadd.f32 %v333, %v334
    %v336 = vrot.slane %v335, 1
    %v337 = vadd.f32 %v335, %v336
    %v338 = vsel %vm266, %v324, 0.0
    %v339 = vrot.slane %v338, 4
    %v340 = vadd.f32 %v338, %v339
    %v341 = vrot.slane %v340, 2
    %v342 = vadd.f32 %v340, %v341
    %v343 = vrot.slane %v342, 1
    %v344 = vadd.f32 %v342, %v343
    %v345 = vsel %vm266, %v325, 0.0
    %v346 = vrot.slane %v345, 4
    %v347 = vadd.f32 %v345, %v346
    %v348 = vrot.slane %v347, 2
    %v349 = vadd.f32 %v347, %v348
    %v350 = vrot.slane %v349, 1
    %v351 = vadd.f32 %v349, %v350
    %v352 = vsel %vm266, %v326, 0.0
    %v353 = vrot.slane %v352, 4
    %v354 = vadd.f32 %v352, %v353
    %v355 = vrot.slane %v354, 2
    %v356 = vadd.f32 %v354, %v355
    %v357 = vrot.slane %v356, 1
    %v358 = vadd.f32 %v356, %v357
    %v359 = vsel %vm266, %v327, 0.0
    %v360 = vrot.slane %v359, 4
    %v361 = vadd.f32 %v359, %v360
    %v362 = vrot.slane %v361, 2
    %v363 = vadd.f32 %v361, %v362
    %v364 = vrot.slane %v363, 1
    %v365 = vadd.f32 %v363, %v364
    %v366 = vsel %vm266, %v328, 0.0
    %v367 = vrot.slane %v366, 4
    %v368 = vadd.f32 %v366, %v367
    %v369 = vrot.slane %v368, 2
    %v370 = vadd.f32 %v368, %v369
    %v371 = vrot.slane %v370, 1
    %v372 = vadd.f32 %v370, %v371
    %v373 = vsel %vm266, %v329, 0.0
    %v374 = vrot.slane %v373, 4
    %v375 = vadd.f32 %v373, %v374
    %v376 = vrot.slane %v375, 2
    %v377 = vadd.f32 %v375, %v376
    %v378 = vrot.slane %v377, 1
    %v379 = vadd.f32 %v377, %v378
    %v380 = vsel %vm266, %v330, 0.0
    %v381 = vrot.slane %v380, 4
    %v382 = vadd.f32 %v380, %v381
    %v383 = vrot.slane %v382, 2
    %v384 = vadd.f32 %v382, %v383
    %v385 = vrot.slane %v384, 1
    %v386 = vadd.f32 %v384, %v385
    %v387 = vmul.f32 %v291, %v321
    %v388 = vmul.f32 %v293, %v321
    %v389 = vmul.f32 %v295, %v321
    %v390 = vmul.f32 %v297, %v321
    %v391 = vmul.f32 %v299, %v321
    %v392 = vmul.f32 %v301, %v321
    %v393 = vmul.f32 %v303, %v321
    %v394 = vmul.f32 %v305, %v321
    %v395 = vsel %vm266, %v387, 0.0
    %v396 = vrot.slane %v395, 4
    %v397 = vadd.f32 %v395, %v396
    %v398 = vrot.slane %v397, 2
    %v399 = vadd.f32 %v397, %v398
    %v400 = vrot.slane %v399, 1
    %v401 = vadd.f32 %v399, %v400
    %v402 = vsel %vm266, %v388, 0.0
    %v403 = vrot.slane %v402, 4
    %v404 = vadd.f32 %v402, %v403
    %v405 = vrot.slane %v404, 2
    %v406 = vadd.f32 %v404, %v405
    %v407 = vrot.slane %v406, 1
    %v408 = vadd.f32 %v406, %v407
    %v409 = vsel %vm266, %v389, 0.0
    %v410 = vrot.slane %v409, 4
    %v411 = vadd.f32 %v409, %v410
    %v412 = vrot.slane %v411, 2
    %v413 = vadd.f32 %v411, %v412
    %v414 = vrot.slane %v413, 1
    %v415 = vadd.f32 %v413, %v414
    %v416 = vsel %vm266, %v390, 0.0
    %v417 = vrot.slane %v416, 4
    %v418 = vadd.f32 %v416, %v417
    %v419 = vrot.slane %v418, 2
    %v420 = vadd.f32 %v418, %v419
    %v421 = vrot.slane %v420, 1
    %v422 = vadd.f32 %v420, %v421
    %v423 = vsel %vm266, %v391, 0.0
    %v424 = vrot.slane %v423, 4
    %v425 = vadd.f32 %v423, %v424
    %v426 = vrot.slane %v425, 2
    %v427 = vadd.f32 %v425, %v426
    %v428 = vrot.slane %v427, 1
    %v429 = vadd.f32 %v427, %v428
    %v430 = vsel %vm266, %v392, 0.0
    %v431 = vrot.slane %v430, 4
    %v432 = vadd.f32 %v430, %v431
    %v433 = vrot.slane %v432, 2
    %v434 = vadd.f32 %v432, %v433
    %v435 = vrot.slane %v434, 1
    %v436 = vadd.f32 %v434, %v435
    %v437 = vsel %vm266, %v393, 0.0
    %v438 = vrot.slane %v437, 4
    %v439 = vadd.f32 %v437, %v438
    %v440 = vrot.slane %v439, 2
    %v441 = vadd.f32 %v439, %v440
    %v442 = vrot.slane %v441, 1
    %v443 = vadd.f32 %v441, %v442
    %v444 = vsel %vm266, %v394, 0.0
    %v445 = vrot.slane %v444, 4
    %v446 = vadd.f32 %v444, %v445
    %v447 = vrot.slane %v446, 2
    %v448 = vadd.f32 %v446, %v447
    %v449 = vrot.slane %v448, 1
    %v450 = vadd.f32 %v448, %v449
    %vm459 = vcmask 1041409
    %v460 = vsel %vm459, %v344, %v337
    %vm461 = vcmask 1042434
    %v462 = vsel %vm461, %v351, %v460
    %vm463 = vcmask 1043459
    %v464 = vsel %vm463, %v358, %v462
    %vm465 = vcmask 1044484
    %v466 = vsel %vm465, %v365, %v464
    %vm467 = vcmask 1045509
    %v468 = vsel %vm467, %v372, %v466
    %vm469 = vcmask 1046534
    %v470 = vsel %vm469, %v379, %v468
    %vm471 = vcmask 1047559
    %v472 = vsel %vm471, %v386, %v470
    %v482 = vsel %vm459, %v408, %v401
    %v483 = vsel %vm461, %v415, %v482
    %v484 = vsel %vm463, %v422, %v483
    %v485 = vsel %vm465, %v429, %v484
    %v486 = vsel %vm467, %v436, %v485
    %v487 = vsel %vm469, %v443, %v486
    %v488 = vsel %vm471, %v450, %v487
    %v490 = vld [vmem:[%s3] sm:$0xff]
    %v491 = vld [vmem:[%s4] sm:$0xff]
    %493 = vset.pattern.permute.xlu0 0
    %494 = vperm.xlu0 %493, %v491
    %v495 = vpop.permute.xlu0 %494
    %vm497 = vcmask 130048
    %v499 = vsel %vm497, %v490, 0
    %501 = vmatprep.subr.mxu0 0.0
    %502 = vmatpush1.msra.mxu0 %v472
    %503 = vmatprep.subr.mxu0 0.0
    %504 = vmatpush1.msra.mxu0 %v488
    %505 = vmatprep.subr.mxu0 0.0
    %506 = vmatpush1.msra.mxu0 0.0
    %507 = vmatprep.subr.mxu0 0.0
    %508 = vmatpush1.msra.mxu0 0.0
    %509 = vmatprep.subr.mxu0 0.0
    %510 = vmatpush1.msra.mxu0 0.0
    %511 = vmatprep.subr.mxu0 0.0
    %512 = vmatpush1.msra.mxu0 0.0
    %513 = vmatprep.subr.mxu0 0.0
    %514 = vmatpush1.msra.mxu0 0.0
    %515 = vmatprep.subr.mxu0 0.0
    %516 = vmatpush1.msra.mxu0 0.0
    %517 = vmatprep.subr.mxu0 0.0
    %518 = vmatpush1.msra.mxu0 0.0
    %519 = vmatprep.subr.mxu0 0.0
    %520 = vmatpush1.msra.mxu0 0.0
    %521 = vmatprep.subr.mxu0 0.0
    %522 = vmatpush1.msra.mxu0 0.0
    %523 = vmatprep.subr.mxu0 0.0
    %524 = vmatpush1.msra.mxu0 0.0
    %525 = vmatprep.subr.mxu0 0.0
    %526 = vmatpush1.msra.mxu0 0.0
    %527 = vmatprep.subr.mxu0 0.0
    %528 = vmatpush1.msra.mxu0 0.0
    %529 = vmatprep.subr.mxu0 0.0
    %530 = vmatpush1.msra.mxu0 0.0
    %531 = vmatprep.subr.mxu0 0.0
    %532 = vmatpush1.msra.mxu0 0.0
    %533 = vmatprep.subr.mxu0 0.0
    %534 = vmatpush1.msra.mxu0 0.0
    %535 = vmatprep.subr.mxu0 0.0
    %536 = vmatpush1.msra.mxu0 0.0
    %537 = vmatprep.subr.mxu0 0.0
    %538 = vmatpush1.msra.mxu0 0.0
    %539 = vmatprep.subr.mxu0 0.0
    %540 = vmatpush1.msra.mxu0 0.0
    %541 = vmatprep.subr.mxu0 0.0
    %542 = vmatpush1.msra.mxu0 0.0
    %543 = vmatprep.subr.mxu0 0.0
    %544 = vmatpush1.msra.mxu0 0.0
    %545 = vmatprep.subr.mxu0 0.0
    %546 = vmatpush1.msra.mxu0 0.0
    %547 = vmatprep.subr.mxu0 0.0
    %548 = vmatpush1.msra.mxu0 0.0
    %549 = vmatprep.subr.mxu0 0.0
    %550 = vmatpush1.msra.mxu0 0.0
    %551 = vmatprep.subr.mxu0 0.0
    %552 = vmatpush1.msra.mxu0 0.0
    %553 = vmatprep.subr.mxu0 0.0
    %554 = vmatpush1.msra.mxu0 0.0
    %555 = vmatprep.subr.mxu0 0.0
    %556 = vmatpush1.msra.mxu0 0.0
    %557 = vmatprep.subr.mxu0 0.0
    %558 = vmatpush1.msra.mxu0 0.0
    %559 = vmatprep.subr.mxu0 0.0
    %560 = vmatpush1.msra.mxu0 0.0
    %561 = vmatprep.subr.mxu0 0.0
    %562 = vmatpush1.msra.mxu0 0.0
    %563 = vmatprep.subr.mxu0 0.0
    %564 = vmatpush1.msra.mxu0 0.0
    %565 = vmatprep.mubr.f32.mxu0 0.0
    %566 = vmatmul.mubr.f32.gmra.mrb[0].mxu0 %v499
    %v567 = vpop.f32.mrb[0].mxu0
    %v568 = vadd.f32 %v495, %v567
    %v569 = vpop.f32.mrb[0].mxu0
    %570 = vdwg.mxu0
    %571 = vst.msk [vmem:[%s5] sm:$0xff] %vm266, %v568
    // Predicated region
    $region26: #{tpu_custom_call.1} parent=1 // pred_check
      _
    $region27: #{tpu_custom_call.1} parent=1 // pred_check_branch
      %573 = sbr.rel (0) target = $region29
    $region28: #{tpu_custom_call.1} parent=1 // pred_region
      _
    $region29: #{tpu_custom_call.1} parent=1 // pred_fallthru
      _
    // Predicated region
    $region30: #{tpu_custom_call.1} parent=1 // pred_check
      _
    $region31: #{tpu_custom_call.1} parent=1 // pred_check_branch
      %575 = sbr.rel (0) target = $region33
    $region32: #{tpu_custom_call.1} parent=1 // pred_region
      _
    $region33: #{tpu_custom_call.1} parent=1 // pred_fallthru
      _
    %576 = vsyncpa [#allocation3], 1

</llo_original>
